<compile_context>
chip_gen: v6e
topology: v6e:2x2x1
jax: 0.10.0
libtpu: 0.0.40
codegen_flags: <defaults>
</compile_context>

<pallas_src>
import jax
import jax.numpy as jnp
import numpy as np
from jax.experimental import pallas as pl
from jax.experimental.pallas import tpu as pltpu

_SQRT_2_OVER_PI = 0.7978845608028654
_GELU_COEFF = 0.044715


def _gelu_tanh(x):
    # tanh-approximate GELU; tanh runs on the EUP slot (free w.r.t. VALU).
    return 0.5 * x * (1.0 + jnp.tanh(_SQRT_2_OVER_PI * (x + _GELU_COEFF * x * x * x)))


def _mlp_kernel(x_ref, w1_ref, b1_ref, w2_ref, b2_ref, o_ref, acc_ref):
    # Grid: (row tile i [parallel], hidden tile k [arbitrary/reduction])
    k = pl.program_id(1)

    @pl.when(k == 0)
    def _():
        acc_ref[...] = jnp.zeros_like(acc_ref)

    # fc1 partial: (tm, C_in) @ (C_in, th) -> f32 accumulate on the MXU.
    h = jnp.dot(x_ref[...], w1_ref[...], preferred_element_type=jnp.float32)
    h = h + b1_ref[...].astype(jnp.float32)          # (1, th) broadcasts

    # GELU epilogue in f32; drop1 is identity (p=0.0).
    h = _gelu_tanh(h)

    # fc2 partial: cast back to the I/O dtype so bf16 inputs keep the MXU at
    # full rate; accumulate this hidden tile's contribution in f32.
    h = h.astype(x_ref.dtype)
    acc_ref[...] += jnp.dot(h, w2_ref[...], preferred_element_type=jnp.float32)

    @pl.when(k == pl.num_programs(1) - 1)
    def _():
        out = acc_ref[...] + b2_ref[...].astype(jnp.float32)   # (1, C_out) broadcasts
        # drop2: identity (p=0.0)
        o_ref[...] = out.astype(o_ref.dtype)


def _round_up(x, m):
    return ((x + m - 1) // m) * m


def mlp_pallas(x, w1, b1, w2, b2, *, row_tile=256, hidden_tile=2048):
    """Fused MLP forward.

    x:  (..., C_in)
    w1: (C_in, H),  b1: (1, H)        (PyTorch fc1 weight is (H, C_in); pre-transposed)
    w2: (H, C_out), b2: (1, C_out)    (PyTorch fc2 weight is (C_out, H); pre-transposed)
    """
    orig_shape = x.shape
    c_in = orig_shape[-1]
    hidden = w1.shape[1]
    c_out = w2.shape[1]

    x2 = x.reshape(-1, c_in)
    m = x2.shape[0]

    # Row tile: multiple of 8 sublanes, capped for VMEM friendliness.
    tm = min(row_tile, _round_up(m, 8))
    m_pad = _round_up(m, tm)
    if m_pad != m:
        x2 = jnp.pad(x2, ((0, m_pad - m), (0, 0)))

    # Hidden tile: multiple of 128 lanes (last dim of the w1 block / sublane
    # dim of the w2 block), capped at hidden_tile.  Pad H with zeros: the
    # padded w2 rows are zero so padded hidden units contribute nothing.
    th = min(hidden_tile, _round_up(hidden, 128))
    h_pad = _round_up(hidden, th)
    if h_pad != hidden:
        w1 = jnp.pad(w1, ((0, 0), (0, h_pad - hidden)))
        b1 = jnp.pad(b1, ((0, 0), (0, h_pad - hidden)))
        w2 = jnp.pad(w2, ((0, h_pad - hidden), (0, 0)))

    grid = (m_pad // tm, h_pad // th)

    out = pl.pallas_call(
        _mlp_kernel,
        out_shape=jax.ShapeDtypeStruct((m_pad, c_out), x.dtype),
        grid_spec=pltpu.PrefetchScalarGridSpec(
            num_scalar_prefetch=0,
            grid=grid,
            in_specs=[
                pl.BlockSpec((tm, c_in), lambda i, k: (i, 0)),     # x rows (resident over k)
                pl.BlockSpec((c_in, th), lambda i, k: (0, k)),     # fc1 weight tile
                pl.BlockSpec((1, th), lambda i, k: (0, k)),        # fc1 bias tile
                pl.BlockSpec((th, c_out), lambda i, k: (k, 0)),    # fc2 weight tile
                pl.BlockSpec((1, c_out), lambda i, k: (0, 0)),     # fc2 bias (resident)
            ],
            out_specs=pl.BlockSpec((tm, c_out), lambda i, k: (i, 0)),
            scratch_shapes=[pltpu.VMEM((tm, c_out), jnp.float32)],
        ),
        compiler_params=pltpu.CompilerParams(
            # row tiles independent (megacore); hidden axis is a reduction.
            dimension_semantics=("parallel", "arbitrary"),
        ),
    )(x2, w1, b1, w2, b2)

    if m_pad != m:
        out = out[:m]
    return out.reshape(*orig_shape[:-1], c_out)


def mlp_reference(x, w1, b1, w2, b2):
    """Pure-JAX reference mirroring the PyTorch forward (drop=0.0)."""
    h = jnp.dot(x, w1) + b1
    h = _gelu_tanh(h)
    return jnp.dot(h, w2) + b2


if __name__ == "__main__":
    # Small ViT-like shapes: B=2, N=8 tokens, in=out=128 channels, hidden=4*128.
    # (128-wide last dim keeps every store lane-dense.)
    B, N = 2, 8
    in_features = 128
    hidden_features = 4 * in_features
    out_features = in_features

    key = jax.random.PRNGKey(0)
    kx, kw1, kb1, kw2, kb2 = jax.random.split(key, 5)

    x = jax.random.normal(kx, (B, N, in_features), dtype=jnp.float32)
    # fc1: Linear(in, hidden)  -> store weight as (in, hidden) for x @ W
    w1 = jax.random.normal(kw1, (in_features, hidden_features), dtype=jnp.float32) * 0.05
    b1 = jax.random.normal(kb1, (1, hidden_features), dtype=jnp.float32) * 0.01
    # fc2: Linear(hidden, out) -> store weight as (hidden, out) for h @ W
    w2 = jax.random.normal(kw2, (hidden_features, out_features), dtype=jnp.float32) * 0.05
    b2 = jax.random.normal(kb2, (1, out_features), dtype=jnp.float32) * 0.01

    ref = mlp_reference(x.reshape(-1, in_features), w1, b1, w2, b2).reshape(
        B, N, out_features
    )

    # 1) Default path: single hidden tile (fully fused, one reduction step).
    out = mlp_pallas(x, w1, b1, w2, b2)
    out = jax.block_until_ready(out)
    np.testing.assert_allclose(np.asarray(out), np.asarray(ref), rtol=1e-4, atol=1e-4)

    # 2) Exercise the hidden-tiled reduction path (2 steps over H=512).
    out2 = mlp_pallas(x, w1, b1, w2, b2, hidden_tile=256)
    out2 = jax.block_until_ready(out2)
    np.testing.assert_allclose(np.asarray(out2), np.asarray(ref), rtol=1e-4, atol=1e-4)

    print("KERNEL_OK")
</pallas_src>

<mosaic_0001>
module attributes {stable_mosaic.version = 11 : i64} {
  func.func @_mlp_kernel(%arg0: i32, %arg1: i32, %arg2: memref<16x128xf32, #tpu.memory_space<vmem>>, %arg3: memref<128x512xf32, #tpu.memory_space<vmem>>, %arg4: memref<1x512xf32, #tpu.memory_space<vmem>>, %arg5: memref<512x128xf32, #tpu.memory_space<vmem>>, %arg6: memref<1x128xf32, #tpu.memory_space<vmem>>, %arg7: memref<16x128xf32, #tpu.memory_space<vmem>>, %arg8: memref<16x128xf32, #tpu.memory_space<vmem>>) attributes {dimension_semantics = [#tpu.dimension_semantics<parallel>, #tpu.dimension_semantics<arbitrary>], iteration_bounds = array<i64: 1, 1>, scalar_prefetch = 0 : i64, scratch_operands = 1 : i64, tpu.core_type = #tpu.core_type<tc>, window_params = [{transform_indices = @transform_0, window_bounds = array<i64: 16, 128>}, {transform_indices = @transform_1, window_bounds = array<i64: 128, 512>}, {transform_indices = @transform_2, window_bounds = array<i64: 1, 512>}, {transform_indices = @transform_3, window_bounds = array<i64: 512, 128>}, {pipeline_mode = #tpu.pipeline_mode<synchronous>, transform_indices = @transform_4, window_bounds = array<i64: 1, 128>}, {transform_indices = @transform_5, window_bounds = array<i64: 16, 128>}]} {
    %c0_i32 = arith.constant 0 : i32
    %0 = arith.cmpi eq, %arg1, %c0_i32 : i32
    %1 = arith.extui %0 : i1 to i32
    %c0_i32_0 = arith.constant 0 : i32
    %2 = arith.cmpi ne, %1, %c0_i32_0 : i32
    scf.if %2 {
      %cst_19 = arith.constant 0.000000e+00 : f32
      %30 = vector.broadcast %cst_19 : f32 to vector<16x128xf32>
      %c0_20 = arith.constant 0 : index
      %c0_21 = arith.constant 0 : index
      %31 = vector.load %arg8[%c0_20, %c0_21] : memref<16x128xf32, #tpu.memory_space<vmem>>, vector<16x128xf32>
      tpu.vector_store %arg8[%c0_20, %c0_21], %30 {strides = array<i32>} : memref<16x128xf32, #tpu.memory_space<vmem>>, vector<16x128xf32>,
    } else {
    }
    %c0 = arith.constant 0 : index
    %c0_1 = arith.constant 0 : index
    %3 = vector.load %arg2[%c0, %c0_1] : memref<16x128xf32, #tpu.memory_space<vmem>>, vector<16x128xf32>
    %c0_2 = arith.constant 0 : index
    %c0_3 = arith.constant 0 : index
    %4 = vector.load %arg3[%c0_2, %c0_3] : memref<128x512xf32, #tpu.memory_space<vmem>>, vector<128x512xf32>
    %cst = arith.constant dense<0.000000e+00> : vector<16x512xf32>
    %5 = tpu.matmul %3, %4, %cst {dimension_numbers = #tpu.dot_dimension_numbers<[1], [0], [0], [1], [0, 0, 1, 1], [], []>} : vector<16x128xf32>, vector<128x512xf32>, vector<16x512xf32> -> vector<16x512xf32>
    %c0_4 = arith.constant 0 : index
    %c0_5 = arith.constant 0 : index
    %6 = vector.load %arg4[%c0_4, %c0_5] : memref<1x512xf32, #tpu.memory_space<vmem>>, vector<1x512xf32>
    %7 = vector.broadcast %6 : vector<1x512xf32> to vector<16x512xf32>
    %8 = arith.addf %5, %7 : vector<16x512xf32>
    %cst_6 = arith.constant 5.000000e-01 : f32
    %9 = vector.broadcast %cst_6 : f32 to vector<16x512xf32>
    %10 = arith.mulf %9, %8 : vector<16x512xf32>
    %cst_7 = arith.constant 4.471500e-02 : f32
    %11 = vector.broadcast %cst_7 : f32 to vector<16x512xf32>
    %12 = arith.mulf %11, %8 : vector<16x512xf32>
    %13 = arith.mulf %12, %8 : vector<16x512xf32>
    %14 = arith.mulf %13, %8 : vector<16x512xf32>
    %15 = arith.addf %8, %14 : vector<16x512xf32>
    %cst_8 = arith.constant 0.797884583 : f32
    %16 = vector.broadcast %cst_8 : f32 to vector<16x512xf32>
    %17 = arith.mulf %16, %15 : vector<16x512xf32>
    %18 = math.tanh %17 : vector<16x512xf32>
    %cst_9 = arith.constant 1.000000e+00 : f32
    %19 = vector.broadcast %cst_9 : f32 to vector<16x512xf32>
    %20 = arith.addf %19, %18 : vector<16x512xf32>
    %21 = arith.mulf %10, %20 : vector<16x512xf32>
    %c0_10 = arith.constant 0 : index
    %c0_11 = arith.constant 0 : index
    %22 = vector.load %arg8[%c0_10, %c0_11] : memref<16x128xf32, #tpu.memory_space<vmem>>, vector<16x128xf32>
    %c0_12 = arith.constant 0 : index
    %c0_13 = arith.constant 0 : index
    %23 = vector.load %arg5[%c0_12, %c0_13] : memref<512x128xf32, #tpu.memory_space<vmem>>, vector<512x128xf32>
    %cst_14 = arith.constant dense<0.000000e+00> : vector<16x128xf32>
    %24 = tpu.matmul %21, %23, %cst_14 {dimension_numbers = #tpu.dot_dimension_numbers<[1], [0], [0], [1], [0, 0, 1, 1], [], []>} : vector<16x512xf32>, vector<512x128xf32>, vector<16x128xf32> -> vector<16x128xf32>
    %25 = arith.addf %22, %24 : vector<16x128xf32>
    %c0_15 = arith.constant 0 : index
    %c0_16 = arith.constant 0 : index
    %26 = vector.load %arg8[%c0_15, %c0_16] : memref<16x128xf32, #tpu.memory_space<vmem>>, vector<16x128xf32>
    tpu.vector_store %arg8[%c0_15, %c0_16], %25 {strides = array<i32>} : memref<16x128xf32, #tpu.memory_space<vmem>>, vector<16x128xf32>,
    %c0_i32_17 = arith.constant 0 : i32
    %27 = arith.cmpi eq, %arg1, %c0_i32_17 : i32
    %28 = arith.extui %27 : i1 to i32
    %c0_i32_18 = arith.constant 0 : i32
    %29 = arith.cmpi ne, %28, %c0_i32_18 : i32
    scf.if %29 {
      %c0_19 = arith.constant 0 : index
      %c0_20 = arith.constant 0 : index
      %30 = vector.load %arg8[%c0_19, %c0_20] : memref<16x128xf32, #tpu.memory_space<vmem>>, vector<16x128xf32>
      %c0_21 = arith.constant 0 : index
      %c0_22 = arith.constant 0 : index
      %31 = vector.load %arg6[%c0_21, %c0_22] : memref<1x128xf32, #tpu.memory_space<vmem>>, vector<1x128xf32>
      %32 = vector.broadcast %31 : vector<1x128xf32> to vector<16x128xf32>
      %33 = arith.addf %30, %32 : vector<16x128xf32>
      %c0_23 = arith.constant 0 : index
      %c0_24 = arith.constant 0 : index
      %34 = vector.load %arg7[%c0_23, %c0_24] : memref<16x128xf32, #tpu.memory_space<vmem>>, vector<16x128xf32>
      tpu.vector_store %arg7[%c0_23, %c0_24], %33 {strides = array<i32>} : memref<16x128xf32, #tpu.memory_space<vmem>>, vector<16x128xf32>,
    } else {
    }
    return
  }
  func.func @transform_0(%arg0: i32, %arg1: i32) -> (i32, i32) {
    %c0_i32 = arith.constant 0 : i32
    %c0_i32_0 = arith.constant 0 : i32
    return %arg0, %c0_i32 : i32, i32
  }
  func.func @transform_1(%arg0: i32, %arg1: i32) -> (i32, i32) {
    %c0_i32 = arith.constant 0 : i32
    %c0_i32_0 = arith.constant 0 : i32
    return %c0_i32, %arg1 : i32, i32
  }
  func.func @transform_2(%arg0: i32, %arg1: i32) -> (i32, i32) {
    %c0_i32 = arith.constant 0 : i32
    %c0_i32_0 = arith.constant 0 : i32
    return %c0_i32, %arg1 : i32, i32
  }
  func.func @transform_3(%arg0: i32, %arg1: i32) -> (i32, i32) {
    %c0_i32 = arith.constant 0 : i32
    %c0_i32_0 = arith.constant 0 : i32
    return %arg1, %c0_i32 : i32, i32
  }
  func.func @transform_4(%arg0: i32, %arg1: i32) -> (i32, i32) {
    %c0_i32 = arith.constant 0 : i32
    %c0_i32_0 = arith.constant 0 : i32
    %c0_i32_1 = arith.constant 0 : i32
    return %c0_i32, %c0_i32_0 : i32, i32
  }
  func.func @transform_5(%arg0: i32, %arg1: i32) -> (i32, i32) {
    %c0_i32 = arith.constant 0 : i32
    %c0_i32_0 = arith.constant 0 : i32
    return %arg0, %c0_i32 : i32, i32
  }
}

</mosaic_0001>

<llo_original>
// kernel: tpu_custom_call.1
$region0: #{tpu_custom_call.1}
  #allocation0 [shape = 'u32[]', space=smem, size = 0x4, offset = 0x4, fixed_abs, tag = 'smem constant byte address 0x4 - core index']
  #allocation1 [shape = 'u32[144,128]{1,0:T(1,128)}', space=vmem, size = 0x12000, scoped, tag = 'internal scratch']
  #allocation2 [shape = 'f32[16,128]{1,0:T(8,128)}', space=vmem, size = 0x2000, scoped, tag = 'scratch operand']
  %s0 = inlined_call_operand.hbm [shape: f32[16,128], index: 0, kind: input, shape index: {}]
  %s1 = inlined_call_operand.hbm [shape: f32[128,512], index: 1, kind: input, shape index: {}]
  %s2 = inlined_call_operand.hbm [shape: f32[1,512], index: 2, kind: input, shape index: {}]
  %s3 = inlined_call_operand.hbm [shape: f32[512,128], index: 3, kind: input, shape index: {}]
  %s4 = inlined_call_operand.vmem [shape: f32[1,128], index: 4, kind: input, shape index: {}]
  %s5 = inlined_call_operand.hbm [shape: f32[16,128], index: 5, kind: output, shape index: {}]
  %s6 = sld [smem:[#allocation0]]
  $region54: #{tpu_custom_call.1} parent=0
    _
  %s8 = ssub.s32 1, %s6
  %s9 = scalar_select 0, %s8, %s6
  $region1: #{tpu_custom_call.1} parent=0
    #allocation3 [shape = 'u8[8192]{0}', space=vmem, size = 0x2000, scoped, tag = 'input window, operand 0, single buffered']
    #allocation4 [shape = 's32[1]{0}', space=sflag, size = 0x4, scoped, tag = 'scoped memory for tpu_custom_call.1']
    #allocation5 [shape = 's32[1]{0}', space=sflag, size = 0x4, scoped, tag = 'scoped memory for tpu_custom_call.1']
    #allocation6 [shape = 'u8[262144]{0}', space=vmem, size = 0x40000, scoped, tag = 'input window, operand 1, single buffered']
    #allocation7 [shape = 's32[1]{0}', space=sflag, size = 0x4, scoped, tag = 'scoped memory for tpu_custom_call.1']
    #allocation8 [shape = 'u8[2048]{0}', space=vmem, size = 0x800, scoped, tag = 'input window, operand 2, single buffered']
    #allocation9 [shape = 'u8[262144]{0}', space=vmem, size = 0x40000, scoped, tag = 'input window, operand 3, single buffered']
    #allocation10 [shape = 's32[1]{0}', space=sflag, size = 0x4, scoped, tag = 'scoped memory for tpu_custom_call.1']
    #allocation11 [shape = 'u8[8192]{0}', space=vmem, size = 0x2000, scoped, tag = 'output window, operand 0, single buffered']
    %10 = vsyncpa [#allocation4], 0
    %11 = vsyncpa [#allocation7], 0
    %12 = vsyncpa [#allocation10], 0
    %13 = vsyncpa [#allocation5], 0
    // Predicated region
    $region2: #{tpu_custom_call.1} parent=1 // pred_check
      _
    $region3: #{tpu_custom_call.1} parent=1 // pred_check_branch
      %15 = sbr.rel (0) target = $region5
    $region4: #{tpu_custom_call.1} parent=1 // pred_region
      %s17 = ssub.s32 256, 256
      %18 = vsyncadd [#allocation4], %s17
      %s19 = sshll.u32 [#allocation3], 4
      %s20 = int_to_ptr.vmem [resolvable:$true] %s19
      %25 = dma.hbm_to_vmem [thread:$0]  %s0, 256, %s20, [#allocation4], 128, 128, 8
    $region5: #{tpu_custom_call.1} parent=1 // pred_fallthru
      _
    // Predicated region
    $region6: #{tpu_custom_call.1} parent=1 // pred_check
      _
    $region7: #{tpu_custom_call.1} parent=1 // pred_check_branch
      %27 = sbr.rel (0) target = $region9
    $region8: #{tpu_custom_call.1} parent=1 // pred_region
      %s29 = ssub.s32 8192, 8192
      %30 = vsyncadd [#allocation7], %s29
      %s31 = sshll.u32 [#allocation6], 4
      %s32 = int_to_ptr.vmem [resolvable:$true] %s31
      %37 = dma.hbm_to_vmem [thread:$0]  %s1, 8192, %s32, [#allocation7], 512, 512, 32
    $region9: #{tpu_custom_call.1} parent=1 // pred_fallthru
      _
    // Predicated region
    $region10: #{tpu_custom_call.1} parent=1 // pred_check
      _
    $region11: #{tpu_custom_call.1} parent=1 // pred_check_branch
      %39 = sbr.rel (0) target = $region13
    $region12: #{tpu_custom_call.1} parent=1 // pred_region
      %s41 = ssub.s32 64, 64
      %42 = vsyncadd [#allocation7], %s41
      %s44 = sshll.u32 [#allocation8], 4
      %s45 = int_to_ptr.vmem [resolvable:$true] %s44
      %47 = dma.hbm_to_vmem [thread:$0]  %s2, 64, %s45, [#allocation7]
    $region13: #{tpu_custom_call.1} parent=1 // pred_fallthru
      _
    // Predicated region
    $region14: #{tpu_custom_call.1} parent=1 // pred_check
      _
    $region15: #{tpu_custom_call.1} parent=1 // pred_check_branch
      %49 = sbr.rel (0) target = $region17
    $region16: #{tpu_custom_call.1} parent=1 // pred_region
      %s51 = ssub.s32 8192, 8192
      %52 = vsyncadd [#allocation10], %s51
      %s53 = sshll.u32 [#allocation9], 4
      %s54 = int_to_ptr.vmem [resolvable:$true] %s53
      %59 = dma.hbm_to_vmem [thread:$0]  %s3, 8192, %s54, [#allocation10], 128, 128, 8
    $region17: #{tpu_custom_call.1} parent=1 // pred_fallthru
      _
    // Predicated region
    $region18: #{tpu_custom_call.1} parent=1 // pred_check
      _
    $region19: #{tpu_custom_call.1} parent=1 // pred_check_branch
      %61 = sbr.rel (0) target = $region21
    $region20: #{tpu_custom_call.1} parent=1 // pred_region
      _
    $region21: #{tpu_custom_call.1} parent=1 // pred_fallthru
      _
    // Predicated region
    $region22: #{tpu_custom_call.1} parent=1 // pred_check
      _
    $region23: #{tpu_custom_call.1} parent=1 // pred_check_branch
      %63 = sbr.rel (0) target = $region25
    $region24: #{tpu_custom_call.1} parent=1 // pred_region
      %64 = dma.done [#allocation4], 256
    $region25: #{tpu_custom_call.1} parent=1 // pred_fallthru
      _
    // Predicated region
    $region26: #{tpu_custom_call.1} parent=1 // pred_check
      _
    $region27: #{tpu_custom_call.1} parent=1 // pred_check_branch
      %66 = sbr.rel (0) target = $region29
    $region28: #{tpu_custom_call.1} parent=1 // pred_region
      %67 = dma.done [#allocation7], 8192
    $region29: #{tpu_custom_call.1} parent=1 // pred_fallthru
      _
    // Predicated region
    $region30: #{tpu_custom_call.1} parent=1 // pred_check
      _
    $region31: #{tpu_custom_call.1} parent=1 // pred_check_branch
      %69 = sbr.rel (0) target = $region33
    $region32: #{tpu_custom_call.1} parent=1 // pred_region
      %70 = dma.done [#allocation7], 64
    $region33: #{tpu_custom_call.1} parent=1 // pred_fallthru
      _
    // Predicated region
    $region34: #{tpu_custom_call.1} parent=1 // pred_check
      _
    $region35: #{tpu_custom_call.1} parent=1 // pred_check_branch
      %72 = sbr.rel (0) target = $region37
    $region36: #{tpu_custom_call.1} parent=1 // pred_region
      %73 = dma.done [#allocation10], 8192
    $region37: #{tpu_custom_call.1} parent=1 // pred_fallthru
      _
    %p74 = scmp.eq.s32.totalorder 0, 0
    // Predicated region
    $region38: #{tpu_custom_call.1} parent=1 // pred_check
      %p75 = pneg %p74
    $region39: #{tpu_custom_call.1} parent=1 // pred_check_branch
      %77 = sbr.rel (%p75) target = $region41
    $region40: #{tpu_custom_call.1} parent=1 // pred_region
      %78 = vst [vmem:[#allocation2] sm:$0xff] 0.0
      %79 = vst [vmem:[#allocation2 + $0x8] sm:$0xff] 0.0
    $region41: #{tpu_custom_call.1} parent=1 // pred_fallthru
      _
    %v80 = vld [vmem:[#allocation3] sm:$0xff]
    %v81 = vld [vmem:[#allocation3 + $0x8] sm:$0xff]
    %v82 = vld [vmem:[#allocation6] sm:$0xff]
    %v83 = vld [vmem:[#allocation6 + $0x8] sm:$0xff]
    %v84 = vld [vmem:[#allocation6 + $0x10] sm:$0xff]
    %v85 = vld [vmem:[#allocation6 + $0x18] sm:$0xff]
    %v86 = vld [vmem:[#allocation6 + $0x20] sm:$0xff]
    %v87 = vld [vmem:[#allocation6 + $0x28] sm:$0xff]
    %v88 = vld [vmem:[#allocation6 + $0x30] sm:$0xff]
    %v89 = vld [vmem:[#allocation6 + $0x38] sm:$0xff]
    %v90 = vld [vmem:[#allocation6 + $0x40] sm:$0xff]
    %v91 = vld [vmem:[#allocation6 + $0x48] sm:$0xff]
    %v92 = vld [vmem:[#allocation6 + $0x50] sm:$0xff]
    %v93 = vld [vmem:[#allocation6 + $0x58] sm:$0xff]
    %v94 = vld [vmem:[#allocation6 + $0x60] sm:$0xff]
    %v95 = vld [vmem:[#allocation6 + $0x68] sm:$0xff]
    %v96 = vld [vmem:[#allocation6 + $0x70] sm:$0xff]
    %v97 = vld [vmem:[#allocation6 + $0x78] sm:$0xff]
    %v98 = vld [vmem:[#allocation6 + $0x80] sm:$0xff]
    %v99 = vld [vmem:[#allocation6 + $0x88] sm:$0xff]
    %v100 = vld [vmem:[#allocation6 + $0x90] sm:$0xff]
    %v101 = vld [vmem:[#allocation6 + $0x98] sm:$0xff]
    %v102 = vld [vmem:[#allocation6 + $0xa0] sm:$0xff]
    %v103 = vld [vmem:[#allocation6 + $0xa8] sm:$0xff]
    %v104 = vld [vmem:[#allocation6 + $0xb0] sm:$0xff]
    %v105 = vld [vmem:[#allocation6 + $0xb8] sm:$0xff]
    %v106 = vld [vmem:[#allocation6 + $0xc0] sm:$0xff]
    %v107 = vld [vmem:[#allocation6 + $0xc8] sm:$0xff]
    %v108 = vld [vmem:[#allocation6 + $0xd0] sm:$0xff]
    %v109 = vld [vmem:[#allocation6 + $0xd8] sm:$0xff]
    %v110 = vld [vmem:[#allocation6 + $0xe0] sm:$0xff]
    %v111 = vld [vmem:[#allocation6 + $0xe8] sm:$0xff]
    %v112 = vld [vmem:[#allocation6 + $0xf0] sm:$0xff]
    %v113 = vld [vmem:[#allocation6 + $0xf8] sm:$0xff]
    %v114 = vld [vmem:[#allocation6 + $0x100] sm:$0xff]
    %v115 = vld [vmem:[#allocation6 + $0x108] sm:$0xff]
    %v116 = vld [vmem:[#allocation6 + $0x110] sm:$0xff]
    %v117 = vld [vmem:[#allocation6 + $0x118] sm:$0xff]
    %v118 = vld [vmem:[#allocation6 + $0x120] sm:$0xff]
    %v119 = vld [vmem:[#allocation6 + $0x128] sm:$0xff]
    %v120 = vld [vmem:[#allocation6 + $0x130] sm:$0xff]
    %v121 = vld [vmem:[#allocation6 + $0x138] sm:$0xff]
    %v122 = vld [vmem:[#allocation6 + $0x140] sm:$0xff]
    %v123 = vld [vmem:[#allocation6 + $0x148] sm:$0xff]
    %v124 = vld [vmem:[#allocation6 + $0x150] sm:$0xff]
    %v125 = vld [vmem:[#allocation6 + $0x158] sm:$0xff]
    %v126 = vld [vmem:[#allocation6 + $0x160] sm:$0xff]
    %v127 = vld [vmem:[#allocation6 + $0x168] sm:$0xff]
    %v128 = vld [vmem:[#allocation6 + $0x170] sm:$0xff]
    %v129 = vld [vmem:[#allocation6 + $0x178] sm:$0xff]
    %v130 = vld [vmem:[#allocation6 + $0x180] sm:$0xff]
    %v131 = vld [vmem:[#allocation6 + $0x188] sm:$0xff]
    %v132 = vld [vmem:[#allocation6 + $0x190] sm:$0xff]
    %v133 = vld [vmem:[#allocation6 + $0x198] sm:$0xff]
    %v134 = vld [vmem:[#allocation6 + $0x1a0] sm:$0xff]
    %v135 = vld [vmem:[#allocation6 + $0x1a8] sm:$0xff]
    %v136 = vld [vmem:[#allocation6 + $0x1b0] sm:$0xff]
    %v137 = vld [vmem:[#allocation6 + $0x1b8] sm:$0xff]
    %v138 = vld [vmem:[#allocation6 + $0x1c0] sm:$0xff]
    %v139 = vld [vmem:[#allocation6 + $0x1c8] sm:$0xff]
    %v140 = vld [vmem:[#allocation6 + $0x1d0] sm:$0xff]
    %v141 = vld [vmem:[#allocation6 + $0x1d8] sm:$0xff]
    %v142 = vld [vmem:[#allocation6 + $0x1e0] sm:$0xff]
    %v143 = vld [vmem:[#allocation6 + $0x1e8] sm:$0xff]
    %v144 = vld [vmem:[#allocation6 + $0x1f0] sm:$0xff]
    %v145 = vld [vmem:[#allocation6 + $0x1f8] sm:$0xff]
    %v146 = vld [vmem:[#allocation8] sm:$0xf]
    %v148 = vlaneseq
    %v149 = vshrl.u32 %v148, 7
    %v150 = vsub.s32 0, %v149
    %v151 = vrot.slane %v146, %v150
    %v152 = vlaneseq
    %v153 = vshrl.u32 %v152, 7
    %v154 = vsub.s32 1, %v153
    %v155 = vrot.slane %v146, %v154
    %v156 = vlaneseq
    %v157 = vshrl.u32 %v156, 7
    %v158 = vsub.s32 2, %v157
    %v159 = vrot.slane %v146, %v158
    %v160 = vlaneseq
    %v161 = vshrl.u32 %v160, 7
    %v162 = vsub.s32 3, %v161
    %v163 = vrot.slane %v146, %v162
    %168 = vmatprep.subr.mxu0 %v143
    %169 = vmatpush1.msra.mxu0 %v142
    %170 = vmatprep.subr.mxu0 %v139
    %171 = vmatpush1.msra.mxu0 %v138
    %172 = vmatprep.subr.mxu0 %v135
    %173 = vmatpush1.msra.mxu0 %v134
    %174 = vmatprep.subr.mxu0 %v131
    %175 = vmatpush1.msra.mxu0 %v130
    %176 = vmatprep.subr.mxu0 %v127
    %177 = vmatpush1.msra.mxu0 %v126
    %178 = vmatprep.subr.mxu0 %v123
    %179 = vmatpush1.msra.mxu0 %v122
    %180 = vmatprep.subr.mxu0 %v119
    %181 = vmatpush1.msra.mxu0 %v118
    %182 = vmatprep.subr.mxu0 %v115
    %183 = vmatpush1.msra.mxu0 %v114
    %184 = vmatprep.subr.mxu0 %v111
    %185 = vmatpush1.msra.mxu0 %v110
    %186 = vmatprep.subr.mxu0 %v107
    %187 = vmatpush1.msra.mxu0 %v106
    %188 = vmatprep.subr.mxu0 %v103
    %189 = vmatpush1.msra.mxu0 %v102
    %190 = vmatprep.subr.mxu0 %v99
    %191 = vmatpush1.msra.mxu0 %v98
    %192 = vmatprep.subr.mxu0 %v95
    %193 = vmatpush1.msra.mxu0 %v94
    %194 = vmatprep.subr.mxu0 %v91
    %195 = vmatpush1.msra.mxu0 %v90
    %196 = vmatprep.subr.mxu0 %v87
    %197 = vmatpush1.msra.mxu0 %v86
    %198 = vmatprep.subr.mxu0 %v83
    %199 = vmatpush1.msra.mxu0 %v82
    %200 = vmatprep.subr.mxu0 0.0
    %201 = vmatpush2.msra.mxu0 0.0
    %202 = vmatprep.subr.mxu0 0.0
    %203 = vmatpush2.msra.mxu0 0.0
    %204 = vmatprep.subr.mxu0 0.0
    %205 = vmatpush2.msra.mxu0 0.0
    %206 = vmatprep.subr.mxu0 0.0
    %207 = vmatpush2.msra.mxu0 0.0
    %208 = vmatprep.subr.mxu0 0.0
    %209 = vmatpush2.msra.mxu0 0.0
    %210 = vmatprep.subr.mxu0 0.0
    %211 = vmatpush2.msra.mxu0 0.0
    %212 = vmatprep.subr.mxu0 0.0
    %213 = vmatpush2.msra.mxu0 0.0
    %214 = vmatprep.subr.mxu0 0.0
    %215 = vmatpush2.msra.mxu0 0.0
    %216 = vmatprep.subr.mxu0 0.0
    %217 = vmatpush2.msra.mxu0 0.0
    %218 = vmatprep.subr.mxu0 0.0
    %219 = vmatpush2.msra.mxu0 0.0
    %220 = vmatprep.subr.mxu0 0.0
    %221 = vmatpush2.msra.mxu0 0.0
    %222 = vmatprep.subr.mxu0 0.0
    %223 = vmatpush2.msra.mxu0 0.0
    %224 = vmatprep.subr.mxu0 0.0
    %225 = vmatpush2.msra.mxu0 0.0
    %226 = vmatprep.subr.mxu0 0.0
    %227 = vmatpush2.msra.mxu0 0.0
    %228 = vmatprep.subr.mxu0 0.0
    %229 = vmatpush2.msra.mxu0 0.0
    %230 = vmatprep.subr.mxu0 0.0
    %231 = vmatpush2.msra.mxu0 0.0
    %232 = vmatprep.mubr.f32.mxu0 0.0
    %233 = vmatmul.mubr.f32.gmra.mxu0 %v80
    %v234 = vpop.f32.mrf.mxu0
    %v235 = vadd.f32 %v151, %v234
    %v236 = vpop.f32.mrf.mxu0
    %v237 = vadd.f32 %v155, %v236
    %238 = vmatprep.mubr.f32.mxu0 0.0
    %239 = vmatmul.mubr.f32.gmra.mxu0 %v81
    %v240 = vpop.f32.mrf.mxu0
    %v241 = vadd.f32 %v151, %v240
    %v242 = vpop.f32.mrf.mxu0
    %v243 = vadd.f32 %v155, %v242
    %244 = vdwg.mxu0
    %245 = vmatprep.subr.mxu0 %v145
    %246 = vmatpush1.msra.mxu0 %v144
    %247 = vmatprep.subr.mxu0 %v141
    %248 = vmatpush1.msra.mxu0 %v140
    %249 = vmatprep.subr.mxu0 %v137
    %250 = vmatpush1.msra.mxu0 %v136
    %251 = vmatprep.subr.mxu0 %v133
    %252 = vmatpush1.msra.mxu0 %v132
    %253 = vmatprep.subr.mxu0 %v129
    %254 = vmatpush1.msra.mxu0 %v128
    %255 = vmatprep.subr.mxu0 %v125
    %256 = vmatpush1.msra.mxu0 %v124
    %257 = vmatprep.subr.mxu0 %v121
    %258 = vmatpush1.msra.mxu0 %v120
    %259 = vmatprep.subr.mxu0 %v117
    %260 = vmatpush1.msra.mxu0 %v116
    %261 = vmatprep.subr.mxu0 %v113
    %262 = vmatpush1.msra.mxu0 %v112
    %263 = vmatprep.subr.mxu0 %v109
    %264 = vmatpush1.msra.mxu0 %v108
    %265 = vmatprep.subr.mxu0 %v105
    %266 = vmatpush1.msra.mxu0 %v104
    %267 = vmatprep.subr.mxu0 %v101
    %268 = vmatpush1.msra.mxu0 %v100
    %269 = vmatprep.subr.mxu0 %v97
    %270 = vmatpush1.msra.mxu0 %v96
    %271 = vmatprep.subr.mxu0 %v93
    %272 = vmatpush1.msra.mxu0 %v92
    %273 = vmatprep.subr.mxu0 %v89
    %274 = vmatpush1.msra.mxu0 %v88
    %275 = vmatprep.subr.mxu0 %v85
    %276 = vmatpush1.msra.mxu0 %v84
    %277 = vmatprep.subr.mxu0 0.0
    %278 = vmatpush2.msra.mxu0 0.0
    %279 = vmatprep.subr.mxu0 0.0
    %280 = vmatpush2.msra.mxu0 0.0
    %281 = vmatprep.subr.mxu0 0.0
    %282 = vmatpush2.msra.mxu0 0.0
    %283 = vmatprep.subr.mxu0 0.0
    %284 = vmatpush2.msra.mxu0 0.0
    %285 = vmatprep.subr.mxu0 0.0
    %286 = vmatpush2.msra.mxu0 0.0
    %287 = vmatprep.subr.mxu0 0.0
    %288 = vmatpush2.msra.mxu0 0.0
    %289 = vmatprep.subr.mxu0 0.0
    %290 = vmatpush2.msra.mxu0 0.0
    %291 = vmatprep.subr.mxu0 0.0
    %292 = vmatpush2.msra.mxu0 0.0
    %293 = vmatprep.subr.mxu0 0.0
    %294 = vmatpush2.msra.mxu0 0.0
    %295 = vmatprep.subr.mxu0 0.0
    %296 = vmatpush2.msra.mxu0 0.0
    %297 = vmatprep.subr.mxu0 0.0
    %298 = vmatpush2.msra.mxu0 0.0
    %299 = vmatprep.subr.mxu0 0.0
    %300 = vmatpush2.msra.mxu0 0.0
    %301 = vmatprep.subr.mxu0 0.0
    %302 = vmatpush2.msra.mxu0 0.0
    %303 = vmatprep.subr.mxu0 0.0
    %304 = vmatpush2.msra.mxu0 0.0
    %305 = vmatprep.subr.mxu0 0.0
    %306 = vmatpush2.msra.mxu0 0.0
    %307 = vmatprep.subr.mxu0 0.0
    %308 = vmatpush2.msra.mxu0 0.0
    %309 = vmatprep.mubr.f32.mxu0 0.0
    %310 = vmatmul.mubr.f32.gmra.mxu0 %v80
    %v311 = vpop.f32.mrf.mxu0
    %v312 = vadd.f32 %v159, %v311
    %v313 = vpop.f32.mrf.mxu0
    %v314 = vadd.f32 %v163, %v313
    %315 = vmatprep.mubr.f32.mxu0 0.0
    %316 = vmatmul.mubr.f32.gmra.mxu0 %v81
    %v317 = vpop.f32.mrf.mxu0
    %v318 = vadd.f32 %v159, %v317
    %v319 = vpop.f32.mrf.mxu0
    %v320 = vadd.f32 %v163, %v319
    %321 = vdwg.mxu0
    %v322 = vmul.f32 %v235, 0.5
    %v323 = vmul.f32 %v237, 0.5
    %v324 = vmul.f32 %v312, 0.5
    %v325 = vmul.f32 %v314, 0.5
    %v326 = vmul.f32 %v241, 0.5
    %v327 = vmul.f32 %v243, 0.5
    %v328 = vmul.f32 %v318, 0.5
    %v329 = vmul.f32 %v320, 0.5
    %v330 = vmul.f32 %v235, 0.044715
    %v331 = vmul.f32 %v237, 0.044715
    %v332 = vmul.f32 %v312, 0.044715
    %v333 = vmul.f32 %v314, 0.044715
    %v334 = vmul.f32 %v241, 0.044715
    %v335 = vmul.f32 %v243, 0.044715
    %v336 = vmul.f32 %v318, 0.044715
    %v337 = vmul.f32 %v320, 0.044715
    %v338 = vmul.f32 %v330, %v235
    %v339 = vmul.f32 %v331, %v237
    %v340 = vmul.f32 %v332, %v312
    %v341 = vmul.f32 %v333, %v314
    %v342 = vmul.f32 %v334, %v241
    %v343 = vmul.f32 %v335, %v243
    %v344 = vmul.f32 %v336, %v318
    %v345 = vmul.f32 %v337, %v320
    %v346 = vmul.f32 %v338, %v235
    %v347 = vmul.f32 %v339, %v237
    %v348 = vmul.f32 %v340, %v312
    %v349 = vmul.f32 %v341, %v314
    %v350 = vmul.f32 %v342, %v241
    %v351 = vmul.f32 %v343, %v243
    %v352 = vmul.f32 %v344, %v318
    %v353 = vmul.f32 %v345, %v320
    %v354 = vadd.f32 %v235, %v346
    %v355 = vadd.f32 %v237, %v347
    %v356 = vadd.f32 %v312, %v348
    %v357 = vadd.f32 %v314, %v349
    %v358 = vadd.f32 %v241, %v350
    %v359 = vadd.f32 %v243, %v351
    %v360 = vadd.f32 %v318, %v352
    %v361 = vadd.f32 %v320, %v353
    %v362 = vmul.f32 %v354, 0.7978846
    %v363 = vmul.f32 %v355, 0.7978846
    %v364 = vmul.f32 %v356, 0.7978846
    %v365 = vmul.f32 %v357, 0.7978846
    %v366 = vmul.f32 %v358, 0.7978846
    %v367 = vmul.f32 %v359, 0.7978846
    %v368 = vmul.f32 %v360, 0.7978846
    %v369 = vmul.f32 %v361, 0.7978846
    %v370 = vtanh.pop %v362
    %v371 = vtanh.pop %v363
    %v372 = vtanh.pop %v364
    %v373 = vtanh.pop %v365
    %v374 = vtanh.pop %v366
    %v375 = vtanh.pop %v367
    %v376 = vtanh.pop %v368
    %v377 = vtanh.pop %v369
    %v378 = vadd.f32 %v370, 1.0
    %v379 = vadd.f32 %v371, 1.0
    %v380 = vadd.f32 %v372, 1.0
    %v381 = vadd.f32 %v373, 1.0
    %v382 = vadd.f32 %v374, 1.0
    %v383 = vadd.f32 %v375, 1.0
    %v384 = vadd.f32 %v376, 1.0
    %v385 = vadd.f32 %v377, 1.0
    %v386 = vmul.f32 %v322, %v378
    %v387 = vmul.f32 %v323, %v379
    %v388 = vmul.f32 %v324, %v380
    %v389 = vmul.f32 %v325, %v381
    %v390 = vmul.f32 %v326, %v382
    %v391 = vmul.f32 %v327, %v383
    %v392 = vmul.f32 %v328, %v384
    %v393 = vmul.f32 %v329, %v385
    %v394 = vld [vmem:[#allocation2] sm:$0xff]
    %v395 = vld [vmem:[#allocation2 + $0x8] sm:$0xff]
    %v396 = vld [vmem:[#allocation9] sm:$0xff]
    %v397 = vld [vmem:[#allocation9 + $0x8] sm:$0xff]
    %v398 = vld [vmem:[#allocation9 + $0x10] sm:$0xff]
    %v399 = vld [vmem:[#allocation9 + $0x18] sm:$0xff]
    %v400 = vld [vmem:[#allocation9 + $0x20] sm:$0xff]
    %v401 = vld [vmem:[#allocation9 + $0x28] sm:$0xff]
    %v402 = vld [vmem:[#allocation9 + $0x30] sm:$0xff]
    %v403 = vld [vmem:[#allocation9 + $0x38] sm:$0xff]
    %v404 = vld [vmem:[#allocation9 + $0x40] sm:$0xff]
    %v405 = vld [vmem:[#allocation9 + $0x48] sm:$0xff]
    %v406 = vld [vmem:[#allocation9 + $0x50] sm:$0xff]
    %v407 = vld [vmem:[#allocation9 + $0x58] sm:$0xff]
    %v408 = vld [vmem:[#allocation9 + $0x60] sm:$0xff]
    %v409 = vld [vmem:[#allocation9 + $0x68] sm:$0xff]
    %v410 = vld [vmem:[#allocation9 + $0x70] sm:$0xff]
    %v411 = vld [vmem:[#allocation9 + $0x78] sm:$0xff]
    %v412 = vld [vmem:[#allocation9 + $0x80] sm:$0xff]
    %v413 = vld [vmem:[#allocation9 + $0x88] sm:$0xff]
    %v414 = vld [vmem:[#allocation9 + $0x90] sm:$0xff]
    %v415 = vld [vmem:[#allocation9 + $0x98] sm:$0xff]
    %v416 = vld [vmem:[#allocation9 + $0xa0] sm:$0xff]
    %v417 = vld [vmem:[#allocation9 + $0xa8] sm:$0xff]
    %v418 = vld [vmem:[#allocation9 + $0xb0] sm:$0xff]
    %v419 = vld [vmem:[#allocation9 + $0xb8] sm:$0xff]
    %v420 = vld [vmem:[#allocation9 + $0xc0] sm:$0xff]
    %v421 = vld [vmem:[#allocation9 + $0xc8] sm:$0xff]
    %v422 = vld [vmem:[#allocation9 + $0xd0] sm:$0xff]
    %v423 = vld [vmem:[#allocation9 + $0xd8] sm:$0xff]
    %v424 = vld [vmem:[#allocation9 + $0xe0] sm:$0xff]
    %v425 = vld [vmem:[#allocation9 + $0xe8] sm:$0xff]
    %v426 = vld [vmem:[#allocation9 + $0xf0] sm:$0xff]
    %v427 = vld [vmem:[#allocation9 + $0xf8] sm:$0xff]
    %v428 = vld [vmem:[#allocation9 + $0x100] sm:$0xff]
    %v429 = vld [vmem:[#allocation9 + $0x108] sm:$0xff]
    %v430 = vld [vmem:[#allocation9 + $0x110] sm:$0xff]
    %v431 = vld [vmem:[#allocation9 + $0x118] sm:$0xff]
    %v432 = vld [vmem:[#allocation9 + $0x120] sm:$0xff]
    %v433 = vld [vmem:[#allocation9 + $0x128] sm:$0xff]
    %v434 = vld [vmem:[#allocation9 + $0x130] sm:$0xff]
    %v435 = vld [vmem:[#allocation9 + $0x138] sm:$0xff]
    %v436 = vld [vmem:[#allocation9 + $0x140] sm:$0xff]
    %v437 = vld [vmem:[#allocation9 + $0x148] sm:$0xff]
    %v438 = vld [vmem:[#allocation9 + $0x150] sm:$0xff]
    %v439 = vld [vmem:[#allocation9 + $0x158] sm:$0xff]
    %v440 = vld [vmem:[#allocation9 + $0x160] sm:$0xff]
    %v441 = vld [vmem:[#allocation9 + $0x168] sm:$0xff]
    %v442 = vld [vmem:[#allocation9 + $0x170] sm:$0xff]
    %v443 = vld [vmem:[#allocation9 + $0x178] sm:$0xff]
    %v444 = vld [vmem:[#allocation9 + $0x180] sm:$0xff]
    %v445 = vld [vmem:[#allocation9 + $0x188] sm:$0xff]
    %v446 = vld [vmem:[#allocation9 + $0x190] sm:$0xff]
    %v447 = vld [vmem:[#allocation9 + $0x198] sm:$0xff]
    %v448 = vld [vmem:[#allocation9 + $0x1a0] sm:$0xff]
    %v449 = vld [vmem:[#allocation9 + $0x1a8] sm:$0xff]
    %v450 = vld [vmem:[#allocation9 + $0x1b0] sm:$0xff]
    %v451 = vld [vmem:[#allocation9 + $0x1b8] sm:$0xff]
    %v452 = vld [vmem:[#allocation9 + $0x1c0] sm:$0xff]
    %v453 = vld [vmem:[#allocation9 + $0x1c8] sm:$0xff]
    %v454 = vld [vmem:[#allocation9 + $0x1d0] sm:$0xff]
    %v455 = vld [vmem:[#allocation9 + $0x1d8] sm:$0xff]
    %v456 = vld [vmem:[#allocation9 + $0x1e0] sm:$0xff]
    %v457 = vld [vmem:[#allocation9 + $0x1e8] sm:$0xff]
    %v458 = vld [vmem:[#allocation9 + $0x1f0] sm:$0xff]
    %v459 = vld [vmem:[#allocation9 + $0x1f8] sm:$0xff]
    %460 = vmatprep.subr.mxu0 0.0
    %461 = vmatpush1.msra.mxu0 %v411
    %462 = vmatprep.subr.mxu0 0.0
    %463 = vmatpush1.msra.mxu0 %v410
    %464 = vmatprep.subr.mxu0 0.0
    %465 = vmatpush1.msra.mxu0 %v409
    %466 = vmatprep.subr.mxu0 0.0
    %467 = vmatpush1.msra.mxu0 %v408
    %468 = vmatprep.subr.mxu0 0.0
    %469 = vmatpush1.msra.mxu0 %v407
    %470 = vmatprep.subr.mxu0 0.0
    %471 = vmatpush1.msra.mxu0 %v406
    %472 = vmatprep.subr.mxu0 0.0
    %473 = vmatpush1.msra.mxu0 %v405
    %474 = vmatprep.subr.mxu0 0.0
    %475 = vmatpush1.msra.mxu0 %v404
    %476 = vmatprep.subr.mxu0 0.0
    %477 = vmatpush1.msra.mxu0 %v403
    %478 = vmatprep.subr.mxu0 0.0
    %479 = vmatpush1.msra.mxu0 %v402
    %480 = vmatprep.subr.mxu0 0.0
    %481 = vmatpush1.msra.mxu0 %v401
    %482 = vmatprep.subr.mxu0 0.0
    %483 = vmatpush1.msra.mxu0 %v400
    %484 = vmatprep.subr.mxu0 0.0
    %485 = vmatpush1.msra.mxu0 %v399
    %486 = vmatprep.subr.mxu0 0.0
    %487 = vmatpush1.msra.mxu0 %v398
    %488 = vmatprep.subr.mxu0 0.0
    %489 = vmatpush1.msra.mxu0 %v397
    %490 = vmatprep.subr.mxu0 0.0
    %491 = vmatpush1.msra.mxu0 %v396
    %492 = vmatprep.subr.mxu0 0.0
    %493 = vmatpush2.msra.mxu0 %v427
    %494 = vmatprep.subr.mxu0 0.0
    %495 = vmatpush2.msra.mxu0 %v426
    %496 = vmatprep.subr.mxu0 0.0
    %497 = vmatpush2.msra.mxu0 %v425
    %498 = vmatprep.subr.mxu0 0.0
    %499 = vmatpush2.msra.mxu0 %v424
    %500 = vmatprep.subr.mxu0 0.0
    %501 = vmatpush2.msra.mxu0 %v423
    %502 = vmatprep.subr.mxu0 0.0
    %503 = vmatpush2.msra.mxu0 %v422
    %504 = vmatprep.subr.mxu0 0.0
    %505 = vmatpush2.msra.mxu0 %v421
    %506 = vmatprep.subr.mxu0 0.0
    %507 = vmatpush2.msra.mxu0 %v420
    %508 = vmatprep.subr.mxu0 0.0
    %509 = vmatpush2.msra.mxu0 %v419
    %510 = vmatprep.subr.mxu0 0.0
    %511 = vmatpush2.msra.mxu0 %v418
    %512 = vmatprep.subr.mxu0 0.0
    %513 = vmatpush2.msra.mxu0 %v417
    %514 = vmatprep.subr.mxu0 0.0
    %515 = vmatpush2.msra.mxu0 %v416
    %516 = vmatprep.subr.mxu0 0.0
    %517 = vmatpush2.msra.mxu0 %v415
    %518 = vmatprep.subr.mxu0 0.0
    %519 = vmatpush2.msra.mxu0 %v414
    %520 = vmatprep.subr.mxu0 0.0
    %521 = vmatpush2.msra.mxu0 %v413
    %522 = vmatprep.subr.mxu0 0.0
    %523 = vmatpush2.msra.mxu0 %v412
    %524 = vmatprep.mubr.f32.mxu0 %v387
    %525 = vmatmul.mubr.f32.gmra.mxu0 %v386
    %v526 = vpop.f32.mrf.mxu0
    %v527 = vadd.f32 0.0, %v526
    %v528 = vpop.f32.mrf.mxu0
    %529 = vmatprep.mubr.f32.mxu0 %v391
    %530 = vmatmul.mubr.f32.gmra.mxu0 %v390
    %v531 = vpop.f32.mrf.mxu0
    %v532 = vadd.f32 0.0, %v531
    %v533 = vpop.f32.mrf.mxu0
    %534 = vdwg.mxu0
    %535 = vmatprep.subr.mxu0 0.0
    %536 = vmatpush1.msra.mxu0 %v443
    %537 = vmatprep.subr.mxu0 0.0
    %538 = vmatpush1.msra.mxu0 %v442
    %539 = vmatprep.subr.mxu0 0.0
    %540 = vmatpush1.msra.mxu0 %v441
    %541 = vmatprep.subr.mxu0 0.0
    %542 = vmatpush1.msra.mxu0 %v440
    %543 = vmatprep.subr.mxu0 0.0
    %544 = vmatpush1.msra.mxu0 %v439
    %545 = vmatprep.subr.mxu0 0.0
    %546 = vmatpush1.msra.mxu0 %v438
    %547 = vmatprep.subr.mxu0 0.0
    %548 = vmatpush1.msra.mxu0 %v437
    %549 = vmatprep.subr.mxu0 0.0
    %550 = vmatpush1.msra.mxu0 %v436
    %551 = vmatprep.subr.mxu0 0.0
    %552 = vmatpush1.msra.mxu0 %v435
    %553 = vmatprep.subr.mxu0 0.0
    %554 = vmatpush1.msra.mxu0 %v434
    %555 = vmatprep.subr.mxu0 0.0
    %556 = vmatpush1.msra.mxu0 %v433
    %557 = vmatprep.subr.mxu0 0.0
    %558 = vmatpush1.msra.mxu0 %v432
    %559 = vmatprep.subr.mxu0 0.0
    %560 = vmatpush1.msra.mxu0 %v431
    %561 = vmatprep.subr.mxu0 0.0
    %562 = vmatpush1.msra.mxu0 %v430
    %563 = vmatprep.subr.mxu0 0.0
    %564 = vmatpush1.msra.mxu0 %v429
    %565 = vmatprep.subr.mxu0 0.0
    %566 = vmatpush1.msra.mxu0 %v428
    %567 = vmatprep.subr.mxu0 0.0
    %568 = vmatpush2.msra.mxu0 %v459
    %569 = vmatprep.subr.mxu0 0.0
    %570 = vmatpush2.msra.mxu0 %v458
    %571 = vmatprep.subr.mxu0 0.0
    %572 = vmatpush2.msra.mxu0 %v457
    %573 = vmatprep.subr.mxu0 0.0
    %574 = vmatpush2.msra.mxu0 %v456
    %575 = vmatprep.subr.mxu0 0.0
    %576 = vmatpush2.msra.mxu0 %v455
    %577 = vmatprep.subr.mxu0 0.0
    %578 = vmatpush2.msra.mxu0 %v454
    %579 = vmatprep.subr.mxu0 0.0
    %580 = vmatpush2.msra.mxu0 %v453
    %581 = vmatprep.subr.mxu0 0.0
    %582 = vmatpush2.msra.mxu0 %v452
    %583 = vmatprep.subr.mxu0 0.0
    %584 = vmatpush2.msra.mxu0 %v451
    %585 = vmatprep.subr.mxu0 0.0
    %586 = vmatpush2.msra.mxu0 %v450
    %587 = vmatprep.subr.mxu0 0.0
    %588 = vmatpush2.msra.mxu0 %v449
    %589 = vmatprep.subr.mxu0 0.0
    %590 = vmatpush2.msra.mxu0 %v448
    %591 = vmatprep.subr.mxu0 0.0
    %592 = vmatpush2.msra.mxu0 %v447
    %593 = vmatprep.subr.mxu0 0.0
    %594 = vmatpush2.msra.mxu0 %v446
    %595 = vmatprep.subr.mxu0 0.0
    %596 = vmatpush2.msra.mxu0 %v445
    %597 = vmatprep.subr.mxu0 0.0
    %598 = vmatpush2.msra.mxu0 %v444
    %599 = vmatprep.mubr.f32.mxu0 %v389
    %600 = vmatmul.mubr.f32.gmra.mxu0 %v388
    %v601 = vpop.f32.mrf.mxu0
    %v602 = vadd.f32 %v527, %v601
    %v603 = vpop.f32.mrf.mxu0
    %604 = vmatprep.mubr.f32.mxu0 %v393
    %605 = vmatmul.mubr.f32.gmra.mxu0 %v392
    %v606 = vpop.f32.mrf.mxu0
    %v607 = vadd.f32 %v532, %v606
    %v608 = vpop.f32.mrf.mxu0
    %609 = vdwg.mxu0
    %v610 = vadd.f32 %v394, %v602
    %v611 = vadd.f32 %v395, %v607
    %612 = vst [vmem:[#allocation2] sm:$0xff] %v610
    %613 = vst [vmem:[#allocation2 + $0x8] sm:$0xff] %v611
    // Predicated region
    $region42: #{tpu_custom_call.1} parent=1 // pred_check
      %p614 = pneg %p74
    $region43: #{tpu_custom_call.1} parent=1 // pred_check_branch
      %616 = sbr.rel (%p614) target = $region45
    $region44: #{tpu_custom_call.1} parent=1 // pred_region
      %v617 = vld [vmem:[#allocation2] sm:$0xff]
      %v618 = vld [vmem:[#allocation2 + $0x8] sm:$0xff]
      %v619 = vld [vmem:[%s4] sm:$0x1]
      %v621 = vlaneseq
      %v622 = vshrl.u32 %v621, 7
      %v623 = vsub.s32 0, %v622
      %v624 = vrot.slane %v619, %v623
      %v626 = vadd.f32 %v617, %v624
      %v627 = vadd.f32 %v618, %v624
      %628 = vst [vmem:[#allocation11] sm:$0xff] %v626
      %629 = vst [vmem:[#allocation11 + $0x8] sm:$0xff] %v627
    $region45: #{tpu_custom_call.1} parent=1 // pred_fallthru
      _
    // Predicated region
    $region46: #{tpu_custom_call.1} parent=1 // pred_check
      _
    $region47: #{tpu_custom_call.1} parent=1 // pred_check_branch
      %631 = sbr.rel (0) target = $region49
    $region48: #{tpu_custom_call.1} parent=1 // pred_region
      %s633 = ssub.s32 256, 256
      %634 = vsyncadd [#allocation5], %s633
      %s635 = sshll.u32 [#allocation11], 4
      %s636 = int_to_ptr.vmem [resolvable:$true] %s635
      %641 = dma.vmem_to_hbm [thread:$0]  %s636, 256, %s5, [#allocation5], 128, 128, 8
    $region49: #{tpu_custom_call.1} parent=1 // pred_fallthru
      _
    // Predicated region
    $region50: #{tpu_custom_call.1} parent=1 // pred_check
      _
    $region51: #{tpu_custom_call.1} parent=1 // pred_check_branch
      %643 = sbr.rel (0) target = $region53
    $region52: #{tpu_custom_call.1} parent=1 // pred_region
      %644 = dma.done [#allocation5], 256
    $region53: #{tpu_custom_call.1} parent=1 // pred_fallthru
      _
    %645 = vsyncpa [#allocation4], 1
    %646 = vsyncpa [#allocation7], 1
    %647 = vsyncpa [#allocation10], 1
    %648 = vsyncpa [#allocation5], 1

</llo_original>
